<compile_context>
chip_gen: v7x
topology: tpu7x:2x2x1
jax: 0.10.0
libtpu: 0.0.40
codegen_flags: <defaults>
</compile_context>

<pallas_src>
import functools

import jax
import jax.numpy as jnp
from jax import lax
from jax.experimental import pallas as pl
from jax.experimental.pallas import tpu as pltpu

INPUT_SIZE = 5
HIDDEN = 32  # H


def bilstm_kernel(x_ref, wih_ref, whh_ref, b_ref, fcw_ref, fcb_ref, out_ref,
                  *, seq_len):
    """Fused bidirectional LSTM + FC head.

    x_ref:   (T*B, 2I)  time-major stacked input: row (t,b) = [x[t,b] | x[T-1-t,b]]
    wih_ref: (2I, 8H)   stacked input->gate weights (fwd rows 0:I, bwd rows I:2I)
    whh_ref: (2H, 8H)   block-structured recurrent weights (both directions)
    b_ref:   (1, 8H)    fused biases (b_ih + b_hh, both directions)
    fcw_ref: (2H, 1)    fc weight (transposed)
    fcb_ref: (1, 1)     fc bias (SMEM scalar)
    out_ref: (B, 1)

    Fused gate-column layout (8H = 256 lanes):
        [ i_f | i_b | f_f | f_b | o_f | o_b | g_f | g_b ]
    so the carried state is h_cat = [h_f | h_b], c_cat = [c_f | c_b] of shape
    (B, 2H), one sigmoid covers lanes [0:6H] and one tanh covers [6H:8H].
    """
    H = HIDDEN
    T = seq_len
    B = out_ref.shape[0]

    # Hoist all VMEM loads out of the recurrence.
    x = x_ref[...]                                     # (T*B, 2I)
    wih = wih_ref[...]
    whh = whh_ref[...]
    b = b_ref[...]

    # Single hoisted input projection for BOTH directions and all timesteps.
    # Because forward / backward gate columns are disjoint and the backward
    # input rows are already time-reversed in the stacked x, row block t of
    # gx_all equals gxf[t] + gxb[T-1-t] exactly.
    gx_all = jnp.dot(x, wih, preferred_element_type=jnp.float32) + b  # (T*B, 8H)

    # Recurrence: state lives in the (unrolled) loop carry, fully static T.
    h_cat = jnp.zeros((B, 2 * H), jnp.float32)
    c_cat = jnp.zeros((B, 2 * H), jnp.float32)
    for t in range(T):
        gx = gx_all[t * B:(t + 1) * B, :]
        gates = jnp.dot(h_cat, whh, preferred_element_type=jnp.float32) + gx
        sig = jax.nn.sigmoid(gates[:, 0:6 * H])        # i|f|o, both directions
        g = jnp.tanh(gates[:, 6 * H:8 * H])            # g,     both directions
        i_cat = sig[:, 0:2 * H]
        f_cat = sig[:, 2 * H:4 * H]
        o_cat = sig[:, 4 * H:6 * H]
        c_cat = f_cat * c_cat + i_cat * g
        h_cat = o_cat * jnp.tanh(c_cat)

    # h_cat is already [h_f | h_b] in the PyTorch cat order -> FC head.
    fcb = fcb_ref[0, 0]
    out_ref[...] = (jnp.dot(h_cat, fcw_ref[...],
                            preferred_element_type=jnp.float32)
                    + fcb).astype(out_ref.dtype)


def bilstm_forward(x, params):
    """x: (B, T, INPUT_SIZE) float32, batch_first like the PyTorch module."""
    B, T, I = x.shape
    # Time-major; stack [x[t] | x[T-1-t]] along features so the kernel needs a
    # single input-projection matmul and no per-step gate-slab adds.
    x_tm = jnp.transpose(x, (1, 0, 2))                       # (T, B, I)
    x_pair = jnp.concatenate([x_tm, x_tm[::-1]], axis=-1)    # (T, B, 2I)
    x2d = x_pair.reshape(T * B, 2 * I)

    vmem = pl.BlockSpec(memory_space=pltpu.MemorySpace.VMEM)
    smem = pl.BlockSpec(memory_space=pltpu.MemorySpace.SMEM)
    call = pl.pallas_call(
        functools.partial(bilstm_kernel, seq_len=T),
        out_shape=jax.ShapeDtypeStruct((B, 1), jnp.float32),
        in_specs=[vmem, vmem, vmem, vmem, vmem, smem],
        out_specs=vmem,
    )
    # TODO(synk): if B grows beyond a few hundred, add a batch-tiled grid with
    # dimension_semantics=("parallel",) so v7x's two TensorCores both run.
    return call(x2d,
                params["wih_stacked"], params["whh_fused"], params["b_fused"],
                params["fcw_T"], params["fcb"])


def _place_gates(w4h_T, direction):
    """Place a (rows, 4H) matrix with PyTorch gate-column order [i|f|g|o] into
    the fused (rows, 8H) layout [i_f,i_b,f_f,f_b,o_f,o_b,g_f,g_b], zero-filling
    the other direction's columns.  direction: 0 = forward, 1 = backward."""
    H = HIDDEN
    rows = w4h_T.shape[0]
    z = jnp.zeros((rows, H), jnp.float32)
    wi = w4h_T[:, 0 * H:1 * H]
    wf = w4h_T[:, 1 * H:2 * H]
    wg = w4h_T[:, 2 * H:3 * H]
    wo = w4h_T[:, 3 * H:4 * H]
    if direction == 0:
        blocks = [wi, z, wf, z, wo, z, wg, z]
    else:
        blocks = [z, wi, z, wf, z, wo, z, wg]
    return jnp.concatenate(blocks, axis=1)


def init_params(key):
    """Deterministic init matching the PyTorch module's parameter shapes,
    plus the fused/permuted copies consumed by the kernel."""
    H = HIDDEN
    k_lstm = 1.0 / jnp.sqrt(jnp.float32(H))
    k_fc = 1.0 / jnp.sqrt(jnp.float32(2 * H))
    ks = jax.random.split(key, 10)

    def u(k, shape, bound):
        return jax.random.uniform(k, shape, jnp.float32, -bound, bound)

    # forward LSTM (PyTorch layout: (4H, I), (4H, H), gate rows i|f|g|o)
    wih_f = u(ks[0], (4 * H, INPUT_SIZE), k_lstm)
    whh_f = u(ks[1], (4 * H, H), k_lstm)
    b_ih_f = u(ks[2], (4 * H,), k_lstm)
    b_hh_f = u(ks[3], (4 * H,), k_lstm)
    # backward LSTM
    wih_b = u(ks[4], (4 * H, INPUT_SIZE), k_lstm)
    whh_b = u(ks[5], (4 * H, H), k_lstm)
    b_ih_b = u(ks[6], (4 * H,), k_lstm)
    b_hh_b = u(ks[7], (4 * H,), k_lstm)
    # fc: Linear(64, 1)
    fcw = u(ks[8], (1, 2 * H), k_fc)
    fcb = u(ks[9], (1,), k_fc)

    b_f = (b_ih_f + b_hh_f).reshape(1, 4 * H)
    b_b = (b_ih_b + b_hh_b).reshape(1, 4 * H)

    return {
        # raw (transposed) PyTorch-layout params — used by the JAX reference
        "wih_f_T": wih_f.T, "whh_f_T": whh_f.T, "b_f": b_f,
        "wih_b_T": wih_b.T, "whh_b_T": whh_b.T, "b_b": b_b,
        "fcw_T": fcw.T, "fcb": fcb.reshape(1, 1),
        # fused / permuted params consumed by the Pallas kernel
        "wih_stacked": jnp.concatenate(
            [_place_gates(wih_f.T, 0), _place_gates(wih_b.T, 1)], axis=0),  # (2I, 8H)
        "whh_fused": jnp.concatenate(
            [_place_gates(whh_f.T, 0), _place_gates(whh_b.T, 1)], axis=0),  # (2H, 8H)
        "b_fused": _place_gates(b_f, 0) + _place_gates(b_b, 1),             # (1, 8H)
    }


def _lstm_ref(x_tm, wih_T, whh_T, b):
    """Pure-JAX reference LSTM (time-major input), returns final hidden state."""
    B = x_tm.shape[1]
    h0 = jnp.zeros((B, HIDDEN), jnp.float32)
    c0 = jnp.zeros((B, HIDDEN), jnp.float32)

    def step(carry, x_t):
        h, c = carry
        gates = x_t @ wih_T + h @ whh_T + b[0]
        i, f, g, o = jnp.split(gates, 4, axis=1)
        c = jax.nn.sigmoid(f) * c + jax.nn.sigmoid(i) * jnp.tanh(g)
        h = jax.nn.sigmoid(o) * jnp.tanh(c)
        return (h, c), None

    (h, _), _ = lax.scan(step, (h0, c0), x_tm)
    return h


def bilstm_reference(x, params):
    x_tm = jnp.transpose(x, (1, 0, 2))
    h_f = _lstm_ref(x_tm, params["wih_f_T"], params["whh_f_T"], params["b_f"])
    h_b = _lstm_ref(x_tm[::-1], params["wih_b_T"], params["whh_b_T"], params["b_b"])
    h = jnp.concatenate([h_f, h_b], axis=1)
    return h @ params["fcw_T"] + params["fcb"]


if __name__ == "__main__":
    key = jax.random.PRNGKey(0)
    k_x, k_p = jax.random.split(key)

    B, T = 2, 8
    x = jax.random.normal(k_x, (B, T, INPUT_SIZE), jnp.float32)
    params = init_params(k_p)

    out = bilstm_forward(x, params)
    out = jax.block_until_ready(out)

    ref = bilstm_reference(x, params)
    assert out.shape == (B, 1)
    assert jnp.allclose(out, ref, atol=1e-5, rtol=1e-5), (out, ref)

    print("KERNEL_OK")
</pallas_src>

<mosaic_0001>
module attributes {stable_mosaic.version = 11 : i64} {
  func.func @bilstm_kernel(%arg0: memref<16x10xf32, #tpu.memory_space<vmem>>, %arg1: memref<10x256xf32, #tpu.memory_space<vmem>>, %arg2: memref<64x256xf32, #tpu.memory_space<vmem>>, %arg3: memref<1x256xf32, #tpu.memory_space<vmem>>, %arg4: memref<64x1xf32, #tpu.memory_space<vmem>>, %arg5: memref<1x1xf32, #tpu.memory_space<smem>>, %arg6: memref<2x1xf32, #tpu.memory_space<vmem>>) attributes {dimension_semantics = [], scalar_prefetch = 0 : i64, scratch_operands = 0 : i64, tpu.core_type = #tpu.core_type<tc>} {
    %c0 = arith.constant 0 : index
    %c0_0 = arith.constant 0 : index
    %0 = vector.load %arg0[%c0, %c0_0] : memref<16x10xf32, #tpu.memory_space<vmem>>, vector<16x10xf32>
    %c0_1 = arith.constant 0 : index
    %c0_2 = arith.constant 0 : index
    %1 = vector.load %arg1[%c0_1, %c0_2] : memref<10x256xf32, #tpu.memory_space<vmem>>, vector<10x256xf32>
    %c0_3 = arith.constant 0 : index
    %c0_4 = arith.constant 0 : index
    %2 = vector.load %arg2[%c0_3, %c0_4] : memref<64x256xf32, #tpu.memory_space<vmem>>, vector<64x256xf32>
    %c0_5 = arith.constant 0 : index
    %c0_6 = arith.constant 0 : index
    %3 = vector.load %arg3[%c0_5, %c0_6] : memref<1x256xf32, #tpu.memory_space<vmem>>, vector<1x256xf32>
    %cst = arith.constant dense<0.000000e+00> : vector<16x256xf32>
    %4 = tpu.matmul %0, %1, %cst {dimension_numbers = #tpu.dot_dimension_numbers<[1], [0], [0], [1], [0, 0, 1, 1], [], []>} : vector<16x10xf32>, vector<10x256xf32>, vector<16x256xf32> -> vector<16x256xf32>
    %5 = vector.broadcast %3 : vector<1x256xf32> to vector<16x256xf32>
    %6 = arith.addf %4, %5 : vector<16x256xf32>
    %cst_7 = arith.constant 0.000000e+00 : f32
    %7 = vector.broadcast %cst_7 : f32 to vector<2x64xf32>
    %cst_8 = arith.constant 0.000000e+00 : f32
    %8 = vector.broadcast %cst_8 : f32 to vector<2x64xf32>
    %9 = vector.extract_strided_slice %6 {offsets = [0, 0], sizes = [2, 256], strides = [1, 1]} : vector<16x256xf32> to vector<2x256xf32>
    %cst_9 = arith.constant dense<0.000000e+00> : vector<2x256xf32>
    %10 = tpu.matmul %7, %2, %cst_9 {dimension_numbers = #tpu.dot_dimension_numbers<[1], [0], [0], [1], [0, 0, 1, 1], [], []>} : vector<2x64xf32>, vector<64x256xf32>, vector<2x256xf32> -> vector<2x256xf32>
    %11 = arith.addf %10, %9 : vector<2x256xf32>
    %12 = vector.extract_strided_slice %11 {offsets = [0, 0], sizes = [2, 192], strides = [1, 1]} : vector<2x256xf32> to vector<2x192xf32>
    %13 = arith.negf %12 : vector<2x192xf32>
    %14 = math.exp %13 : vector<2x192xf32>
    %cst_10 = arith.constant 1.000000e+00 : f32
    %15 = vector.broadcast %cst_10 : f32 to vector<2x192xf32>
    %16 = arith.addf %15, %14 : vector<2x192xf32>
    %17 = arith.divf %15, %16 : vector<2x192xf32>
    %18 = vector.extract_strided_slice %11 {offsets = [0, 192], sizes = [2, 64], strides = [1, 1]} : vector<2x256xf32> to vector<2x64xf32>
    %19 = math.tanh %18 : vector<2x64xf32>
    %20 = vector.extract_strided_slice %17 {offsets = [0, 0], sizes = [2, 64], strides = [1, 1]} : vector<2x192xf32> to vector<2x64xf32>
    %21 = vector.extract_strided_slice %17 {offsets = [0, 64], sizes = [2, 64], strides = [1, 1]} : vector<2x192xf32> to vector<2x64xf32>
    %22 = vector.extract_strided_slice %17 {offsets = [0, 128], sizes = [2, 64], strides = [1, 1]} : vector<2x192xf32> to vector<2x64xf32>
    %23 = arith.mulf %21, %8 : vector<2x64xf32>
    %24 = arith.mulf %20, %19 : vector<2x64xf32>
    %25 = arith.addf %23, %24 : vector<2x64xf32>
    %26 = math.tanh %25 : vector<2x64xf32>
    %27 = arith.mulf %22, %26 : vector<2x64xf32>
    %28 = vector.extract_strided_slice %6 {offsets = [2, 0], sizes = [2, 256], strides = [1, 1]} : vector<16x256xf32> to vector<2x256xf32>
    %cst_11 = arith.constant dense<0.000000e+00> : vector<2x256xf32>
    %29 = tpu.matmul %27, %2, %cst_11 {dimension_numbers = #tpu.dot_dimension_numbers<[1], [0], [0], [1], [0, 0, 1, 1], [], []>} : vector<2x64xf32>, vector<64x256xf32>, vector<2x256xf32> -> vector<2x256xf32>
    %30 = arith.addf %29, %28 : vector<2x256xf32>
    %31 = vector.extract_strided_slice %30 {offsets = [0, 0], sizes = [2, 192], strides = [1, 1]} : vector<2x256xf32> to vector<2x192xf32>
    %32 = arith.negf %31 : vector<2x192xf32>
    %33 = math.exp %32 : vector<2x192xf32>
    %cst_12 = arith.constant 1.000000e+00 : f32
    %34 = vector.broadcast %cst_12 : f32 to vector<2x192xf32>
    %35 = arith.addf %34, %33 : vector<2x192xf32>
    %36 = arith.divf %34, %35 : vector<2x192xf32>
    %37 = vector.extract_strided_slice %30 {offsets = [0, 192], sizes = [2, 64], strides = [1, 1]} : vector<2x256xf32> to vector<2x64xf32>
    %38 = math.tanh %37 : vector<2x64xf32>
    %39 = vector.extract_strided_slice %36 {offsets = [0, 0], sizes = [2, 64], strides = [1, 1]} : vector<2x192xf32> to vector<2x64xf32>
    %40 = vector.extract_strided_slice %36 {offsets = [0, 64], sizes = [2, 64], strides = [1, 1]} : vector<2x192xf32> to vector<2x64xf32>
    %41 = vector.extract_strided_slice %36 {offsets = [0, 128], sizes = [2, 64], strides = [1, 1]} : vector<2x192xf32> to vector<2x64xf32>
    %42 = arith.mulf %40, %25 : vector<2x64xf32>
    %43 = arith.mulf %39, %38 : vector<2x64xf32>
    %44 = arith.addf %42, %43 : vector<2x64xf32>
    %45 = math.tanh %44 : vector<2x64xf32>
    %46 = arith.mulf %41, %45 : vector<2x64xf32>
    %47 = vector.extract_strided_slice %6 {offsets = [4, 0], sizes = [2, 256], strides = [1, 1]} : vector<16x256xf32> to vector<2x256xf32>
    %cst_13 = arith.constant dense<0.000000e+00> : vector<2x256xf32>
    %48 = tpu.matmul %46, %2, %cst_13 {dimension_numbers = #tpu.dot_dimension_numbers<[1], [0], [0], [1], [0, 0, 1, 1], [], []>} : vector<2x64xf32>, vector<64x256xf32>, vector<2x256xf32> -> vector<2x256xf32>
    %49 = arith.addf %48, %47 : vector<2x256xf32>
    %50 = vector.extract_strided_slice %49 {offsets = [0, 0], sizes = [2, 192], strides = [1, 1]} : vector<2x256xf32> to vector<2x192xf32>
    %51 = arith.negf %50 : vector<2x192xf32>
    %52 = math.exp %51 : vector<2x192xf32>
    %cst_14 = arith.constant 1.000000e+00 : f32
    %53 = vector.broadcast %cst_14 : f32 to vector<2x192xf32>
    %54 = arith.addf %53, %52 : vector<2x192xf32>
    %55 = arith.divf %53, %54 : vector<2x192xf32>
    %56 = vector.extract_strided_slice %49 {offsets = [0, 192], sizes = [2, 64], strides = [1, 1]} : vector<2x256xf32> to vector<2x64xf32>
    %57 = math.tanh %56 : vector<2x64xf32>
    %58 = vector.extract_strided_slice %55 {offsets = [0, 0], sizes = [2, 64], strides = [1, 1]} : vector<2x192xf32> to vector<2x64xf32>
    %59 = vector.extract_strided_slice %55 {offsets = [0, 64], sizes = [2, 64], strides = [1, 1]} : vector<2x192xf32> to vector<2x64xf32>
    %60 = vector.extract_strided_slice %55 {offsets = [0, 128], sizes = [2, 64], strides = [1, 1]} : vector<2x192xf32> to vector<2x64xf32>
    %61 = arith.mulf %59, %44 : vector<2x64xf32>
    %62 = arith.mulf %58, %57 : vector<2x64xf32>
    %63 = arith.addf %61, %62 : vector<2x64xf32>
    %64 = math.tanh %63 : vector<2x64xf32>
    %65 = arith.mulf %60, %64 : vector<2x64xf32>
    %66 = vector.extract_strided_slice %6 {offsets = [6, 0], sizes = [2, 256], strides = [1, 1]} : vector<16x256xf32> to vector<2x256xf32>
    %cst_15 = arith.constant dense<0.000000e+00> : vector<2x256xf32>
    %67 = tpu.matmul %65, %2, %cst_15 {dimension_numbers = #tpu.dot_dimension_numbers<[1], [0], [0], [1], [0, 0, 1, 1], [], []>} : vector<2x64xf32>, vector<64x256xf32>, vector<2x256xf32> -> vector<2x256xf32>
    %68 = arith.addf %67, %66 : vector<2x256xf32>
    %69 = vector.extract_strided_slice %68 {offsets = [0, 0], sizes = [2, 192], strides = [1, 1]} : vector<2x256xf32> to vector<2x192xf32>
    %70 = arith.negf %69 : vector<2x192xf32>
    %71 = math.exp %70 : vector<2x192xf32>
    %cst_16 = arith.constant 1.000000e+00 : f32
    %72 = vector.broadcast %cst_16 : f32 to vector<2x192xf32>
    %73 = arith.addf %72, %71 : vector<2x192xf32>
    %74 = arith.divf %72, %73 : vector<2x192xf32>
    %75 = vector.extract_strided_slice %68 {offsets = [0, 192], sizes = [2, 64], strides = [1, 1]} : vector<2x256xf32> to vector<2x64xf32>
    %76 = math.tanh %75 : vector<2x64xf32>
    %77 = vector.extract_strided_slice %74 {offsets = [0, 0], sizes = [2, 64], strides = [1, 1]} : vector<2x192xf32> to vector<2x64xf32>
    %78 = vector.extract_strided_slice %74 {offsets = [0, 64], sizes = [2, 64], strides = [1, 1]} : vector<2x192xf32> to vector<2x64xf32>
    %79 = vector.extract_strided_slice %74 {offsets = [0, 128], sizes = [2, 64], strides = [1, 1]} : vector<2x192xf32> to vector<2x64xf32>
    %80 = arith.mulf %78, %63 : vector<2x64xf32>
    %81 = arith.mulf %77, %76 : vector<2x64xf32>
    %82 = arith.addf %80, %81 : vector<2x64xf32>
    %83 = math.tanh %82 : vector<2x64xf32>
    %84 = arith.mulf %79, %83 : vector<2x64xf32>
    %85 = vector.extract_strided_slice %6 {offsets = [8, 0], sizes = [2, 256], strides = [1, 1]} : vector<16x256xf32> to vector<2x256xf32>
    %cst_17 = arith.constant dense<0.000000e+00> : vector<2x256xf32>
    %86 = tpu.matmul %84, %2, %cst_17 {dimension_numbers = #tpu.dot_dimension_numbers<[1], [0], [0], [1], [0, 0, 1, 1], [], []>} : vector<2x64xf32>, vector<64x256xf32>, vector<2x256xf32> -> vector<2x256xf32>
    %87 = arith.addf %86, %85 : vector<2x256xf32>
    %88 = vector.extract_strided_slice %87 {offsets = [0, 0], sizes = [2, 192], strides = [1, 1]} : vector<2x256xf32> to vector<2x192xf32>
    %89 = arith.negf %88 : vector<2x192xf32>
    %90 = math.exp %89 : vector<2x192xf32>
    %cst_18 = arith.constant 1.000000e+00 : f32
    %91 = vector.broadcast %cst_18 : f32 to vector<2x192xf32>
    %92 = arith.addf %91, %90 : vector<2x192xf32>
    %93 = arith.divf %91, %92 : vector<2x192xf32>
    %94 = vector.extract_strided_slice %87 {offsets = [0, 192], sizes = [2, 64], strides = [1, 1]} : vector<2x256xf32> to vector<2x64xf32>
    %95 = math.tanh %94 : vector<2x64xf32>
    %96 = vector.extract_strided_slice %93 {offsets = [0, 0], sizes = [2, 64], strides = [1, 1]} : vector<2x192xf32> to vector<2x64xf32>
    %97 = vector.extract_strided_slice %93 {offsets = [0, 64], sizes = [2, 64], strides = [1, 1]} : vector<2x192xf32> to vector<2x64xf32>
    %98 = vector.extract_strided_slice %93 {offsets = [0, 128], sizes = [2, 64], strides = [1, 1]} : vector<2x192xf32> to vector<2x64xf32>
    %99 = arith.mulf %97, %82 : vector<2x64xf32>
    %100 = arith.mulf %96, %95 : vector<2x64xf32>
    %101 = arith.addf %99, %100 : vector<2x64xf32>
    %102 = math.tanh %101 : vector<2x64xf32>
    %103 = arith.mulf %98, %102 : vector<2x64xf32>
    %104 = vector.extract_strided_slice %6 {offsets = [10, 0], sizes = [2, 256], strides = [1, 1]} : vector<16x256xf32> to vector<2x256xf32>
    %cst_19 = arith.constant dense<0.000000e+00> : vector<2x256xf32>
    %105 = tpu.matmul %103, %2, %cst_19 {dimension_numbers = #tpu.dot_dimension_numbers<[1], [0], [0], [1], [0, 0, 1, 1], [], []>} : vector<2x64xf32>, vector<64x256xf32>, vector<2x256xf32> -> vector<2x256xf32>
    %106 = arith.addf %105, %104 : vector<2x256xf32>
    %107 = vector.extract_strided_slice %106 {offsets = [0, 0], sizes = [2, 192], strides = [1, 1]} : vector<2x256xf32> to vector<2x192xf32>
    %108 = arith.negf %107 : vector<2x192xf32>
    %109 = math.exp %108 : vector<2x192xf32>
    %cst_20 = arith.constant 1.000000e+00 : f32
    %110 = vector.broadcast %cst_20 : f32 to vector<2x192xf32>
    %111 = arith.addf %110, %109 : vector<2x192xf32>
    %112 = arith.divf %110, %111 : vector<2x192xf32>
    %113 = vector.extract_strided_slice %106 {offsets = [0, 192], sizes = [2, 64], strides = [1, 1]} : vector<2x256xf32> to vector<2x64xf32>
    %114 = math.tanh %113 : vector<2x64xf32>
    %115 = vector.extract_strided_slice %112 {offsets = [0, 0], sizes = [2, 64], strides = [1, 1]} : vector<2x192xf32> to vector<2x64xf32>
    %116 = vector.extract_strided_slice %112 {offsets = [0, 64], sizes = [2, 64], strides = [1, 1]} : vector<2x192xf32> to vector<2x64xf32>
    %117 = vector.extract_strided_slice %112 {offsets = [0, 128], sizes = [2, 64], strides = [1, 1]} : vector<2x192xf32> to vector<2x64xf32>
    %118 = arith.mulf %116, %101 : vector<2x64xf32>
    %119 = arith.mulf %115, %114 : vector<2x64xf32>
    %120 = arith.addf %118, %119 : vector<2x64xf32>
    %121 = math.tanh %120 : vector<2x64xf32>
    %122 = arith.mulf %117, %121 : vector<2x64xf32>
    %123 = vector.extract_strided_slice %6 {offsets = [12, 0], sizes = [2, 256], strides = [1, 1]} : vector<16x256xf32> to vector<2x256xf32>
    %cst_21 = arith.constant dense<0.000000e+00> : vector<2x256xf32>
    %124 = tpu.matmul %122, %2, %cst_21 {dimension_numbers = #tpu.dot_dimension_numbers<[1], [0], [0], [1], [0, 0, 1, 1], [], []>} : vector<2x64xf32>, vector<64x256xf32>, vector<2x256xf32> -> vector<2x256xf32>
    %125 = arith.addf %124, %123 : vector<2x256xf32>
    %126 = vector.extract_strided_slice %125 {offsets = [0, 0], sizes = [2, 192], strides = [1, 1]} : vector<2x256xf32> to vector<2x192xf32>
    %127 = arith.negf %126 : vector<2x192xf32>
    %128 = math.exp %127 : vector<2x192xf32>
    %cst_22 = arith.constant 1.000000e+00 : f32
    %129 = vector.broadcast %cst_22 : f32 to vector<2x192xf32>
    %130 = arith.addf %129, %128 : vector<2x192xf32>
    %131 = arith.divf %129, %130 : vector<2x192xf32>
    %132 = vector.extract_strided_slice %125 {offsets = [0, 192], sizes = [2, 64], strides = [1, 1]} : vector<2x256xf32> to vector<2x64xf32>
    %133 = math.tanh %132 : vector<2x64xf32>
    %134 = vector.extract_strided_slice %131 {offsets = [0, 0], sizes = [2, 64], strides = [1, 1]} : vector<2x192xf32> to vector<2x64xf32>
    %135 = vector.extract_strided_slice %131 {offsets = [0, 64], sizes = [2, 64], strides = [1, 1]} : vector<2x192xf32> to vector<2x64xf32>
    %136 = vector.extract_strided_slice %131 {offsets = [0, 128], sizes = [2, 64], strides = [1, 1]} : vector<2x192xf32> to vector<2x64xf32>
    %137 = arith.mulf %135, %120 : vector<2x64xf32>
    %138 = arith.mulf %134, %133 : vector<2x64xf32>
    %139 = arith.addf %137, %138 : vector<2x64xf32>
    %140 = math.tanh %139 : vector<2x64xf32>
    %141 = arith.mulf %136, %140 : vector<2x64xf32>
    %142 = vector.extract_strided_slice %6 {offsets = [14, 0], sizes = [2, 256], strides = [1, 1]} : vector<16x256xf32> to vector<2x256xf32>
    %cst_23 = arith.constant dense<0.000000e+00> : vector<2x256xf32>
    %143 = tpu.matmul %141, %2, %cst_23 {dimension_numbers = #tpu.dot_dimension_numbers<[1], [0], [0], [1], [0, 0, 1, 1], [], []>} : vector<2x64xf32>, vector<64x256xf32>, vector<2x256xf32> -> vector<2x256xf32>
    %144 = arith.addf %143, %142 : vector<2x256xf32>
    %145 = vector.extract_strided_slice %144 {offsets = [0, 0], sizes = [2, 192], strides = [1, 1]} : vector<2x256xf32> to vector<2x192xf32>
    %146 = arith.negf %145 : vector<2x192xf32>
    %147 = math.exp %146 : vector<2x192xf32>
    %cst_24 = arith.constant 1.000000e+00 : f32
    %148 = vector.broadcast %cst_24 : f32 to vector<2x192xf32>
    %149 = arith.addf %148, %147 : vector<2x192xf32>
    %150 = arith.divf %148, %149 : vector<2x192xf32>
    %151 = vector.extract_strided_slice %144 {offsets = [0, 192], sizes = [2, 64], strides = [1, 1]} : vector<2x256xf32> to vector<2x64xf32>
    %152 = math.tanh %151 : vector<2x64xf32>
    %153 = vector.extract_strided_slice %150 {offsets = [0, 0], sizes = [2, 64], strides = [1, 1]} : vector<2x192xf32> to vector<2x64xf32>
    %154 = vector.extract_strided_slice %150 {offsets = [0, 64], sizes = [2, 64], strides = [1, 1]} : vector<2x192xf32> to vector<2x64xf32>
    %155 = vector.extract_strided_slice %150 {offsets = [0, 128], sizes = [2, 64], strides = [1, 1]} : vector<2x192xf32> to vector<2x64xf32>
    %156 = arith.mulf %154, %139 : vector<2x64xf32>
    %157 = arith.mulf %153, %152 : vector<2x64xf32>
    %158 = arith.addf %156, %157 : vector<2x64xf32>
    %159 = math.tanh %158 : vector<2x64xf32>
    %160 = arith.mulf %155, %159 : vector<2x64xf32>
    %c0_25 = arith.constant 0 : index
    %c0_26 = arith.constant 0 : index
    %161 = memref.load %arg5[%c0_25, %c0_26] : memref<1x1xf32, #tpu.memory_space<smem>>
    %c0_27 = arith.constant 0 : index
    %c0_28 = arith.constant 0 : index
    %162 = vector.load %arg4[%c0_27, %c0_28] : memref<64x1xf32, #tpu.memory_space<vmem>>, vector<64x1xf32>
    %cst_29 = arith.constant dense<0.000000e+00> : vector<2x1xf32>
    %163 = tpu.matmul %160, %162, %cst_29 {dimension_numbers = #tpu.dot_dimension_numbers<[1], [0], [0], [1], [0, 0, 1, 1], [], []>} : vector<2x64xf32>, vector<64x1xf32>, vector<2x1xf32> -> vector<2x1xf32>
    %164 = vector.broadcast %161 : f32 to vector<2x1xf32>
    %165 = arith.addf %163, %164 : vector<2x1xf32>
    %c0_30 = arith.constant 0 : index
    %c0_31 = arith.constant 0 : index
    %166 = vector.load %arg6[%c0_30, %c0_31] : memref<2x1xf32, #tpu.memory_space<vmem>>, vector<2x1xf32>
    tpu.vector_store %arg6[%c0_30, %c0_31], %165 {strides = array<i32>} : memref<2x1xf32, #tpu.memory_space<vmem>>, vector<2x1xf32>,
    return
  }
}

</mosaic_0001>

<llo_original>
// kernel: tpu_custom_call.1
$region0: #{tpu_custom_call.1}
  #allocation0 [shape = 'u32[]', space=smem, size = 0x4, offset = 0x4, fixed_abs, tag = 'smem constant byte address 0x4 - core index']
  #allocation1 [shape = 'u32[144,128]{1,0:T(1,128)}', space=vmem, size = 0x12000, scoped, tag = 'internal scratch']
  #allocation2 [shape = 'f32[1,1]{1,0:T(1,128)S(6)}', space=smem, size = 0x200, scoped, tag = 'scoped memory for tpu_custom_call.1']
  %s0 = inlined_call_operand.vmem [shape: f32[16,10], index: 0, kind: input, shape index: {}]
  %s1 = inlined_call_operand.vmem [shape: f32[10,256], index: 1, kind: input, shape index: {}]
  %s2 = inlined_call_operand.hbm [shape: f32[64,256], index: 2, kind: input, shape index: {}]
  %s3 = inlined_call_operand.vmem [shape: f32[1,256], index: 3, kind: input, shape index: {}]
  %s4 = inlined_call_operand.vmem [shape: f32[64,1], index: 4, kind: input, shape index: {}]
  %s5 = inlined_call_operand.<no memory space> [shape: f32[1,1], index: 5, kind: input, shape index: {}]
  %s6 = inlined_call_operand.vmem [shape: f32[2,1], index: 6, kind: output, shape index: {}]
  %s7 = sld [smem:[#allocation0]]
  $region38: #{tpu_custom_call.1} parent=0
    _
  %s9 = ssub.s32 1, %s7
  %s10 = scalar_select 0, %s9, %s7
  %11 = sst [smem:[#allocation2]] %s5
  $region1: #{tpu_custom_call.1} parent=0
    #allocation3 [shape = 'u8[65536]{0}', space=vmem, size = 0x10000, scoped, tag = 'input window, operand 2, single buffered']
    #allocation4 [shape = 's32[1]{0}', space=sflag, size = 0x4, scoped, tag = 'scoped memory for tpu_custom_call.1']
    %12 = vsyncpa [#allocation4], 0
    // Predicated region
    $region2: #{tpu_custom_call.1} parent=1 // pred_check
      _
    $region3: #{tpu_custom_call.1} parent=1 // pred_check_branch
      %14 = sbr.rel (0) target = $region5
    $region4: #{tpu_custom_call.1} parent=1 // pred_region
      _
    $region5: #{tpu_custom_call.1} parent=1 // pred_fallthru
      _
    // Predicated region
    $region6: #{tpu_custom_call.1} parent=1 // pred_check
      _
    $region7: #{tpu_custom_call.1} parent=1 // pred_check_branch
      %16 = sbr.rel (0) target = $region9
    $region8: #{tpu_custom_call.1} parent=1 // pred_region
      _
    $region9: #{tpu_custom_call.1} parent=1 // pred_fallthru
      _
    // Predicated region
    $region10: #{tpu_custom_call.1} parent=1 // pred_check
      _
    $region11: #{tpu_custom_call.1} parent=1 // pred_check_branch
      %18 = sbr.rel (0) target = $region13
    $region12: #{tpu_custom_call.1} parent=1 // pred_region
      %s20 = ssub.s32 2048, 2048
      %21 = vsyncadd [#allocation4], %s20
      %s22 = sshll.u32 [#allocation3], 4
      %s23 = int_to_ptr.vmem [resolvable:$true] %s22
      %28 = dma.hbm_to_vmem [thread:$0]  %s2, 2048, %s23, [#allocation4], 256, 256, 16
    $region13: #{tpu_custom_call.1} parent=1 // pred_fallthru
      _
    // Predicated region
    $region14: #{tpu_custom_call.1} parent=1 // pred_check
      _
    $region15: #{tpu_custom_call.1} parent=1 // pred_check_branch
      %30 = sbr.rel (0) target = $region17
    $region16: #{tpu_custom_call.1} parent=1 // pred_region
      _
    $region17: #{tpu_custom_call.1} parent=1 // pred_fallthru
      _
    // Predicated region
    $region18: #{tpu_custom_call.1} parent=1 // pred_check
      _
    $region19: #{tpu_custom_call.1} parent=1 // pred_check_branch
      %32 = sbr.rel (0) target = $region21
    $region20: #{tpu_custom_call.1} parent=1 // pred_region
      _
    $region21: #{tpu_custom_call.1} parent=1 // pred_fallthru
      _
    // Predicated region
    $region22: #{tpu_custom_call.1} parent=1 // pred_check
      _
    $region23: #{tpu_custom_call.1} parent=1 // pred_check_branch
      %34 = sbr.rel (0) target = $region25
    $region24: #{tpu_custom_call.1} parent=1 // pred_region
      _
    $region25: #{tpu_custom_call.1} parent=1 // pred_fallthru
      _
    // Predicated region
    $region26: #{tpu_custom_call.1} parent=1 // pred_check
      _
    $region27: #{tpu_custom_call.1} parent=1 // pred_check_branch
      %36 = sbr.rel (0) target = $region29
    $region28: #{tpu_custom_call.1} parent=1 // pred_region
      %37 = dma.done [#allocation4], 2048
    $region29: #{tpu_custom_call.1} parent=1 // pred_fallthru
      _
    %v38 = vld [vmem:[%s0] sm:$0xff]
    %v39 = vld [vmem:[%s0 + $0x8] sm:$0xff]
    %v40 = vld [vmem:[%s1] sm:$0xff]
    %v41 = vld [vmem:[%s1 + $0x8] sm:$0xff]
    %v42 = vld [vmem:[%s1 + $0x10] sm:$0x3]
    %v43 = vld [vmem:[%s1 + $0x18] sm:$0x3]
    %v44 = vld [vmem:[#allocation3] sm:$0xff]
    %v45 = vld [vmem:[#allocation3 + $0x8] sm:$0xff]
    %v46 = vld [vmem:[#allocation3 + $0x10] sm:$0xff]
    %v47 = vld [vmem:[#allocation3 + $0x18] sm:$0xff]
    %v48 = vld [vmem:[#allocation3 + $0x20] sm:$0xff]
    %v49 = vld [vmem:[#allocation3 + $0x28] sm:$0xff]
    %v50 = vld [vmem:[#allocation3 + $0x30] sm:$0xff]
    %v51 = vld [vmem:[#allocation3 + $0x38] sm:$0xff]
    %v52 = vld [vmem:[#allocation3 + $0x40] sm:$0xff]
    %v53 = vld [vmem:[#allocation3 + $0x48] sm:$0xff]
    %v54 = vld [vmem:[#allocation3 + $0x50] sm:$0xff]
    %v55 = vld [vmem:[#allocation3 + $0x58] sm:$0xff]
    %v56 = vld [vmem:[#allocation3 + $0x60] sm:$0xff]
    %v57 = vld [vmem:[#allocation3 + $0x68] sm:$0xff]
    %v58 = vld [vmem:[#allocation3 + $0x70] sm:$0xff]
    %v59 = vld [vmem:[#allocation3 + $0x78] sm:$0xff]
    %v60 = vld [vmem:[%s3] sm:$0x3]
    %v62 = vlaneseq
    %v63 = vshrl.u32 %v62, 7
    %v64 = vsub.s32 0, %v63
    %v65 = vrot.slane %v60, %v64
    %v66 = vlaneseq
    %v67 = vshrl.u32 %v66, 7
    %v68 = vsub.s32 1, %v67
    %v69 = vrot.slane %v60, %v68
    %vm72 = vcmask 80896
    %v74 = vsel %vm72, %v38, 0
    %v77 = vsel %vm72, %v39, 0
    %vm79 = vcmask 1041408
    %v81 = vsel %vm79, %v42, 0
    %v84 = vsel %vm79, %v43, 0
    %86 = vmatprep.subr.mxu0 %v41
    %87 = vmatpush1.msra.mxu0 %v40
    %88 = vmatprep.subr.mxu0 %v84
    %89 = vmatpush1.msra.mxu0 %v81
    %90 = vmatprep.subr.mxu0 0.0
    %91 = vmatpush1.msra.mxu0 0.0
    %92 = vmatprep.subr.mxu0 0.0
    %93 = vmatpush1.msra.mxu0 0.0
    %94 = vmatprep.subr.mxu0 0.0
    %95 = vmatpush1.msra.mxu0 0.0
    %96 = vmatprep.subr.mxu0 0.0
    %97 = vmatpush1.msra.mxu0 0.0
    %98 = vmatprep.subr.mxu0 0.0
    %99 = vmatpush1.msra.mxu0 0.0
    %100 = vmatprep.subr.mxu0 0.0
    %101 = vmatpush1.msra.mxu0 0.0
    %102 = vmatprep.subr.mxu0 0.0
    %103 = vmatpush1.msra.mxu0 0.0
    %104 = vmatprep.subr.mxu0 0.0
    %105 = vmatpush1.msra.mxu0 0.0
    %106 = vmatprep.subr.mxu0 0.0
    %107 = vmatpush1.msra.mxu0 0.0
    %108 = vmatprep.subr.mxu0 0.0
    %109 = vmatpush1.msra.mxu0 0.0
    %110 = vmatprep.subr.mxu0 0.0
    %111 = vmatpush1.msra.mxu0 0.0
    %112 = vmatprep.subr.mxu0 0.0
    %113 = vmatpush1.msra.mxu0 0.0
    %114 = vmatprep.subr.mxu0 0.0
    %115 = vmatpush1.msra.mxu0 0.0
    %116 = vmatprep.subr.mxu0 0.0
    %117 = vmatpush1.msra.mxu0 0.0
    %118 = vmatprep.subr.mxu0 0.0
    %119 = vmatpush1.msra.mxu0 0.0
    %120 = vmatprep.subr.mxu0 0.0
    %121 = vmatpush1.msra.mxu0 0.0
    %122 = vmatprep.subr.mxu0 0.0
    %123 = vmatpush1.msra.mxu0 0.0
    %124 = vmatprep.subr.mxu0 0.0
    %125 = vmatpush1.msra.mxu0 0.0
    %126 = vmatprep.subr.mxu0 0.0
    %127 = vmatpush1.msra.mxu0 0.0
    %128 = vmatprep.subr.mxu0 0.0
    %129 = vmatpush1.msra.mxu0 0.0
    %130 = vmatprep.subr.mxu0 0.0
    %131 = vmatpush1.msra.mxu0 0.0
    %132 = vmatprep.subr.mxu0 0.0
    %133 = vmatpush1.msra.mxu0 0.0
    %134 = vmatprep.subr.mxu0 0.0
    %135 = vmatpush1.msra.mxu0 0.0
    %136 = vmatprep.subr.mxu0 0.0
    %137 = vmatpush1.msra.mxu0 0.0
    %138 = vmatprep.subr.mxu0 0.0
    %139 = vmatpush1.msra.mxu0 0.0
    %140 = vmatprep.subr.mxu0 0.0
    %141 = vmatpush1.msra.mxu0 0.0
    %142 = vmatprep.subr.mxu0 0.0
    %143 = vmatpush1.msra.mxu0 0.0
    %144 = vmatprep.subr.mxu0 0.0
    %145 = vmatpush1.msra.mxu0 0.0
    %146 = vmatprep.subr.mxu0 0.0
    %147 = vmatpush1.msra.mxu0 0.0
    %148 = vmatprep.subr.mxu0 0.0
    %149 = vmatpush1.msra.mxu0 0.0
    %150 = vmatprep.mubr.f32.mxu0 0.0
    %151 = vmatmul.mubr.f32.gmra.mrb[0].mxu0 %v74
    %v152 = vpop.f32.mrb[0].mxu0
    %v153 = vadd.f32 %v65, %v152
    %v154 = vpop.f32.mrb[0].mxu0
    %v155 = vadd.f32 %v69, %v154
    %156 = vmatprep.mubr.f32.mxu0 0.0
    %157 = vmatmul.mubr.f32.gmra.mrb[0].mxu0 %v77
    %v158 = vpop.f32.mrb[0].mxu0
    %v159 = vadd.f32 %v65, %v158
    %v160 = vpop.f32.mrb[0].mxu0
    %v161 = vadd.f32 %v69, %v160
    %162 = vdwg.mxu0
    %vm163 = vcmask 523264
    %v165 = vsel %vm163, 0.0, 0
    %167 = vmatprep.subr.mxu0 %v45
    %168 = vmatpush1.msra.mxu0 %v44
    %169 = vmatprep.subr.mxu0 %v47
    %170 = vmatpush1.msra.mxu0 %v46
    %171 = vmatprep.subr.mxu0 %v49
    %172 = vmatpush1.msra.mxu0 %v48
    %173 = vmatprep.subr.mxu0 %v51
    %174 = vmatpush1.msra.mxu0 %v50
    %175 = vmatprep.subr.mxu0 %v53
    %176 = vmatpush1.msra.mxu0 %v52
    %177 = vmatprep.subr.mxu0 %v55
    %178 = vmatpush1.msra.mxu0 %v54
    %179 = vmatprep.subr.mxu0 %v57
    %180 = vmatpush1.msra.mxu0 %v56
    %181 = vmatprep.subr.mxu0 %v59
    %182 = vmatpush1.msra.mxu0 %v58
    %183 = vmatprep.subr.mxu0 0.0
    %184 = vmatpush1.msra.mxu0 0.0
    %185 = vmatprep.subr.mxu0 0.0
    %186 = vmatpush1.msra.mxu0 0.0
    %187 = vmatprep.subr.mxu0 0.0
    %188 = vmatpush1.msra.mxu0 0.0
    %189 = vmatprep.subr.mxu0 0.0
    %190 = vmatpush1.msra.mxu0 0.0
    %191 = vmatprep.subr.mxu0 0.0
    %192 = vmatpush1.msra.mxu0 0.0
    %193 = vmatprep.subr.mxu0 0.0
    %194 = vmatpush1.msra.mxu0 0.0
    %195 = vmatprep.subr.mxu0 0.0
    %196 = vmatpush1.msra.mxu0 0.0
    %197 = vmatprep.subr.mxu0 0.0
    %198 = vmatpush1.msra.mxu0 0.0
    %199 = vmatprep.subr.mxu0 0.0
    %200 = vmatpush1.msra.mxu0 0.0
    %201 = vmatprep.subr.mxu0 0.0
    %202 = vmatpush1.msra.mxu0 0.0
    %203 = vmatprep.subr.mxu0 0.0
    %204 = vmatpush1.msra.mxu0 0.0
    %205 = vmatprep.subr.mxu0 0.0
    %206 = vmatpush1.msra.mxu0 0.0
    %207 = vmatprep.subr.mxu0 0.0
    %208 = vmatpush1.msra.mxu0 0.0
    %209 = vmatprep.subr.mxu0 0.0
    %210 = vmatpush1.msra.mxu0 0.0
    %211 = vmatprep.subr.mxu0 0.0
    %212 = vmatpush1.msra.mxu0 0.0
    %213 = vmatprep.subr.mxu0 0.0
    %214 = vmatpush1.msra.mxu0 0.0
    %215 = vmatprep.subr.mxu0 0.0
    %216 = vmatpush1.msra.mxu0 0.0
    %217 = vmatprep.subr.mxu0 0.0
    %218 = vmatpush1.msra.mxu0 0.0
    %219 = vmatprep.subr.mxu0 0.0
    %220 = vmatpush1.msra.mxu0 0.0
    %221 = vmatprep.subr.mxu0 0.0
    %222 = vmatpush1.msra.mxu0 0.0
    %223 = vmatprep.subr.mxu0 0.0
    %224 = vmatpush1.msra.mxu0 0.0
    %225 = vmatprep.subr.mxu0 0.0
    %226 = vmatpush1.msra.mxu0 0.0
    %227 = vmatprep.subr.mxu0 0.0
    %228 = vmatpush1.msra.mxu0 0.0
    %229 = vmatprep.subr.mxu0 0.0
    %230 = vmatpush1.msra.mxu0 0.0
    %231 = vmatprep.mubr.f32.mxu0 0.0
    %232 = vmatmul.mubr.f32.gmra.mrb[0].mxu0 %v165
    %v233 = vpop.f32.mrb[0].mxu0
    %v234 = vadd.f32 %v153, %v233
    %v235 = vpop.f32.mrb[0].mxu0
    %v236 = vadd.f32 %v155, %v235
    %237 = vdwg.mxu0
    %v238 = vxor.u32 %v234, 2147483648
    %v239 = vxor.u32 %v236, 2147483648
    %v240 = vmul.f32 %v238, 1.442695
    %v241 = vpow.pop %v240
    %v242 = vmul.f32 %v239, 1.442695
    %v243 = vpow.pop %v242
    %v244 = vadd.f32 %v241, 1.0
    %v245 = vadd.f32 %v243, 1.0
    %v246 = vrcp.pop %v244
    %v247 = vmul.f32 1.0, %v246
    %v248 = vrcp.pop %v245
    %v249 = vmul.f32 1.0, %v248
    %v250 = vtanh.pop %v236
    %v251 = vmul.f32 %v247, 0.0
    %253 = vrot.lane.b32.xlu0 %v250, 64
    %v254 = vpop.permute.xlu0 %253
    %v256 = vmul.f32 %v247, %v254
    %258 = vrot.lane.b32.xlu0 %v256, 64
    %v259 = vpop.permute.xlu0 %258
    %v261 = vadd.f32 %v251, %v259
    %v262 = vtanh.pop %v261
    %264 = vrot.lane.b32.xlu0 %v262, 64
    %v265 = vpop.permute.xlu0 %264
    %v267 = vmul.f32 %v249, %v265
    %v270 = vrot.slane %v153, 2
    %v271 = vrot.slane %v155, 2
    %v275 = vsel %vm163, %v267, 0
    %277 = vmatprep.subr.mxu0 %v45
    %278 = vmatpush1.msra.mxu0 %v44
    %279 = vmatprep.subr.mxu0 %v47
    %280 = vmatpush1.msra.mxu0 %v46
    %281 = vmatprep.subr.mxu0 %v49
    %282 = vmatpush1.msra.mxu0 %v48
    %283 = vmatprep.subr.mxu0 %v51
    %284 = vmatpush1.msra.mxu0 %v50
    %285 = vmatprep.subr.mxu0 %v53
    %286 = vmatpush1.msra.mxu0 %v52
    %287 = vmatprep.subr.mxu0 %v55
    %288 = vmatpush1.msra.mxu0 %v54
    %289 = vmatprep.subr.mxu0 %v57
    %290 = vmatpush1.msra.mxu0 %v56
    %291 = vmatprep.subr.mxu0 %v59
    %292 = vmatpush1.msra.mxu0 %v58
    %293 = vmatprep.subr.mxu0 0.0
    %294 = vmatpush1.msra.mxu0 0.0
    %295 = vmatprep.subr.mxu0 0.0
    %296 = vmatpush1.msra.mxu0 0.0
    %297 = vmatprep.subr.mxu0 0.0
    %298 = vmatpush1.msra.mxu0 0.0
    %299 = vmatprep.subr.mxu0 0.0
    %300 = vmatpush1.msra.mxu0 0.0
    %301 = vmatprep.subr.mxu0 0.0
    %302 = vmatpush1.msra.mxu0 0.0
    %303 = vmatprep.subr.mxu0 0.0
    %304 = vmatpush1.msra.mxu0 0.0
    %305 = vmatprep.subr.mxu0 0.0
    %306 = vmatpush1.msra.mxu0 0.0
    %307 = vmatprep.subr.mxu0 0.0
    %308 = vmatpush1.msra.mxu0 0.0
    %309 = vmatprep.subr.mxu0 0.0
    %310 = vmatpush1.msra.mxu0 0.0
    %311 = vmatprep.subr.mxu0 0.0
    %312 = vmatpush1.msra.mxu0 0.0
    %313 = vmatprep.subr.mxu0 0.0
    %314 = vmatpush1.msra.mxu0 0.0
    %315 = vmatprep.subr.mxu0 0.0
    %316 = vmatpush1.msra.mxu0 0.0
    %317 = vmatprep.subr.mxu0 0.0
    %318 = vmatpush1.msra.mxu0 0.0
    %319 = vmatprep.subr.mxu0 0.0
    %320 = vmatpush1.msra.mxu0 0.0
    %321 = vmatprep.subr.mxu0 0.0
    %322 = vmatpush1.msra.mxu0 0.0
    %323 = vmatprep.subr.mxu0 0.0
    %324 = vmatpush1.msra.mxu0 0.0
    %325 = vmatprep.subr.mxu0 0.0
    %326 = vmatpush1.msra.mxu0 0.0
    %327 = vmatprep.subr.mxu0 0.0
    %328 = vmatpush1.msra.mxu0 0.0
    %329 = vmatprep.subr.mxu0 0.0
    %330 = vmatpush1.msra.mxu0 0.0
    %331 = vmatprep.subr.mxu0 0.0
    %332 = vmatpush1.msra.mxu0 0.0
    %333 = vmatprep.subr.mxu0 0.0
    %334 = vmatpush1.msra.mxu0 0.0
    %335 = vmatprep.subr.mxu0 0.0
    %336 = vmatpush1.msra.mxu0 0.0
    %337 = vmatprep.subr.mxu0 0.0
    %338 = vmatpush1.msra.mxu0 0.0
    %339 = vmatprep.subr.mxu0 0.0
    %340 = vmatpush1.msra.mxu0 0.0
    %341 = vmatprep.mubr.f32.mxu0 0.0
    %342 = vmatmul.mubr.f32.gmra.mrb[0].mxu0 %v275
    %v343 = vpop.f32.mrb[0].mxu0
    %v344 = vadd.f32 %v270, %v343
    %v345 = vpop.f32.mrb[0].mxu0
    %v346 = vadd.f32 %v271, %v345
    %347 = vdwg.mxu0
    %v348 = vxor.u32 %v344, 2147483648
    %v349 = vxor.u32 %v346, 2147483648
    %v350 = vmul.f32 %v348, 1.442695
    %v351 = vpow.pop %v350
    %v352 = vmul.f32 %v349, 1.442695
    %v353 = vpow.pop %v352
    %v354 = vadd.f32 %v351, 1.0
    %v355 = vadd.f32 %v353, 1.0
    %v356 = vrcp.pop %v354
    %v357 = vmul.f32 1.0, %v356
    %v358 = vrcp.pop %v355
    %v359 = vmul.f32 1.0, %v358
    %v360 = vtanh.pop %v346
    %v361 = vmul.f32 %v357, %v261
    %363 = vrot.lane.b32.xlu0 %v360, 64
    %v364 = vpop.permute.xlu0 %363
    %v366 = vmul.f32 %v357, %v364
    %368 = vrot.lane.b32.xlu0 %v366, 64
    %v369 = vpop.permute.xlu0 %368
    %v371 = vadd.f32 %v361, %v369
    %v372 = vtanh.pop %v371
    %374 = vrot.lane.b32.xlu0 %v372, 64
    %v375 = vpop.permute.xlu0 %374
    %v377 = vmul.f32 %v359, %v375
    %v378 = vrot.slane %v153, 4
    %v379 = vrot.slane %v155, 4
    %v383 = vsel %vm163, %v377, 0
    %385 = vmatprep.subr.mxu0 %v45
    %386 = vmatpush1.msra.mxu0 %v44
    %387 = vmatprep.subr.mxu0 %v47
    %388 = vmatpush1.msra.mxu0 %v46
    %389 = vmatprep.subr.mxu0 %v49
    %390 = vmatpush1.msra.mxu0 %v48
    %391 = vmatprep.subr.mxu0 %v51
    %392 = vmatpush1.msra.mxu0 %v50
    %393 = vmatprep.subr.mxu0 %v53
    %394 = vmatpush1.msra.mxu0 %v52
    %395 = vmatprep.subr.mxu0 %v55
    %396 = vmatpush1.msra.mxu0 %v54
    %397 = vmatprep.subr.mxu0 %v57
    %398 = vmatpush1.msra.mxu0 %v56
    %399 = vmatprep.subr.mxu0 %v59
    %400 = vmatpush1.msra.mxu0 %v58
    %401 = vmatprep.subr.mxu0 0.0
    %402 = vmatpush1.msra.mxu0 0.0
    %403 = vmatprep.subr.mxu0 0.0
    %404 = vmatpush1.msra.mxu0 0.0
    %405 = vmatprep.subr.mxu0 0.0
    %406 = vmatpush1.msra.mxu0 0.0
    %407 = vmatprep.subr.mxu0 0.0
    %408 = vmatpush1.msra.mxu0 0.0
    %409 = vmatprep.subr.mxu0 0.0
    %410 = vmatpush1.msra.mxu0 0.0
    %411 = vmatprep.subr.mxu0 0.0
    %412 = vmatpush1.msra.mxu0 0.0
    %413 = vmatprep.subr.mxu0 0.0
    %414 = vmatpush1.msra.mxu0 0.0
    %415 = vmatprep.subr.mxu0 0.0
    %416 = vmatpush1.msra.mxu0 0.0
    %417 = vmatprep.subr.mxu0 0.0
    %418 = vmatpush1.msra.mxu0 0.0
    %419 = vmatprep.subr.mxu0 0.0
    %420 = vmatpush1.msra.mxu0 0.0
    %421 = vmatprep.subr.mxu0 0.0
    %422 = vmatpush1.msra.mxu0 0.0
    %423 = vmatprep.subr.mxu0 0.0
    %424 = vmatpush1.msra.mxu0 0.0
    %425 = vmatprep.subr.mxu0 0.0
    %426 = vmatpush1.msra.mxu0 0.0
    %427 = vmatprep.subr.mxu0 0.0
    %428 = vmatpush1.msra.mxu0 0.0
    %429 = vmatprep.subr.mxu0 0.0
    %430 = vmatpush1.msra.mxu0 0.0
    %431 = vmatprep.subr.mxu0 0.0
    %432 = vmatpush1.msra.mxu0 0.0
    %433 = vmatprep.subr.mxu0 0.0
    %434 = vmatpush1.msra.mxu0 0.0
    %435 = vmatprep.subr.mxu0 0.0
    %436 = vmatpush1.msra.mxu0 0.0
    %437 = vmatprep.subr.mxu0 0.0
    %438 = vmatpush1.msra.mxu0 0.0
    %439 = vmatprep.subr.mxu0 0.0
    %440 = vmatpush1.msra.mxu0 0.0
    %441 = vmatprep.subr.mxu0 0.0
    %442 = vmatpush1.msra.mxu0 0.0
    %443 = vmatprep.subr.mxu0 0.0
    %444 = vmatpush1.msra.mxu0 0.0
    %445 = vmatprep.subr.mxu0 0.0
    %446 = vmatpush1.msra.mxu0 0.0
    %447 = vmatprep.subr.mxu0 0.0
    %448 = vmatpush1.msra.mxu0 0.0
    %449 = vmatprep.mubr.f32.mxu0 0.0
    %450 = vmatmul.mubr.f32.gmra.mrb[0].mxu0 %v383
    %v451 = vpop.f32.mrb[0].mxu0
    %v452 = vadd.f32 %v378, %v451
    %v453 = vpop.f32.mrb[0].mxu0
    %v454 = vadd.f32 %v379, %v453
    %455 = vdwg.mxu0
    %v456 = vxor.u32 %v452, 2147483648
    %v457 = vxor.u32 %v454, 2147483648
    %v458 = vmul.f32 %v456, 1.442695
    %v459 = vpow.pop %v458
    %v460 = vmul.f32 %v457, 1.442695
    %v461 = vpow.pop %v460
    %v462 = vadd.f32 %v459, 1.0
    %v463 = vadd.f32 %v461, 1.0
    %v464 = vrcp.pop %v462
    %v465 = vmul.f32 1.0, %v464
    %v466 = vrcp.pop %v463
    %v467 = vmul.f32 1.0, %v466
    %v468 = vtanh.pop %v454
    %v469 = vmul.f32 %v465, %v371
    %471 = vrot.lane.b32.xlu0 %v468, 64
    %v472 = vpop.permute.xlu0 %471
    %v474 = vmul.f32 %v465, %v472
    %476 = vrot.lane.b32.xlu0 %v474, 64
    %v477 = vpop.permute.xlu0 %476
    %v479 = vadd.f32 %v469, %v477
    %v480 = vtanh.pop %v479
    %482 = vrot.lane.b32.xlu0 %v480, 64
    %v483 = vpop.permute.xlu0 %482
    %v485 = vmul.f32 %v467, %v483
    %v486 = vrot.slane %v153, 6
    %v487 = vrot.slane %v155, 6
    %v491 = vsel %vm163, %v485, 0
    %493 = vmatprep.subr.mxu0 %v45
    %494 = vmatpush1.msra.mxu0 %v44
    %495 = vmatprep.subr.mxu0 %v47
    %496 = vmatpush1.msra.mxu0 %v46
    %497 = vmatprep.subr.mxu0 %v49
    %498 = vmatpush1.msra.mxu0 %v48
    %499 = vmatprep.subr.mxu0 %v51
    %500 = vmatpush1.msra.mxu0 %v50
    %501 = vmatprep.subr.mxu0 %v53
    %502 = vmatpush1.msra.mxu0 %v52
    %503 = vmatprep.subr.mxu0 %v55
    %504 = vmatpush1.msra.mxu0 %v54
    %505 = vmatprep.subr.mxu0 %v57
    %506 = vmatpush1.msra.mxu0 %v56
    %507 = vmatprep.subr.mxu0 %v59
    %508 = vmatpush1.msra.mxu0 %v58
    %509 = vmatprep.subr.mxu0 0.0
    %510 = vmatpush1.msra.mxu0 0.0
    %511 = vmatprep.subr.mxu0 0.0
    %512 = vmatpush1.msra.mxu0 0.0
    %513 = vmatprep.subr.mxu0 0.0
    %514 = vmatpush1.msra.mxu0 0.0
    %515 = vmatprep.subr.mxu0 0.0
    %516 = vmatpush1.msra.mxu0 0.0
    %517 = vmatprep.subr.mxu0 0.0
    %518 = vmatpush1.msra.mxu0 0.0
    %519 = vmatprep.subr.mxu0 0.0
    %520 = vmatpush1.msra.mxu0 0.0
    %521 = vmatprep.subr.mxu0 0.0
    %522 = vmatpush1.msra.mxu0 0.0
    %523 = vmatprep.subr.mxu0 0.0
    %524 = vmatpush1.msra.mxu0 0.0
    %525 = vmatprep.subr.mxu0 0.0
    %526 = vmatpush1.msra.mxu0 0.0
    %527 = vmatprep.subr.mxu0 0.0
    %528 = vmatpush1.msra.mxu0 0.0
    %529 = vmatprep.subr.mxu0 0.0
    %530 = vmatpush1.msra.mxu0 0.0
    %531 = vmatprep.subr.mxu0 0.0
    %532 = vmatpush1.msra.mxu0 0.0
    %533 = vmatprep.subr.mxu0 0.0
    %534 = vmatpush1.msra.mxu0 0.0
    %535 = vmatprep.subr.mxu0 0.0
    %536 = vmatpush1.msra.mxu0 0.0
    %537 = vmatprep.subr.mxu0 0.0
    %538 = vmatpush1.msra.mxu0 0.0
    %539 = vmatprep.subr.mxu0 0.0
    %540 = vmatpush1.msra.mxu0 0.0
    %541 = vmatprep.subr.mxu0 0.0
    %542 = vmatpush1.msra.mxu0 0.0
    %543 = vmatprep.subr.mxu0 0.0
    %544 = vmatpush1.msra.mxu0 0.0
    %545 = vmatprep.subr.mxu0 0.0
    %546 = vmatpush1.msra.mxu0 0.0
    %547 = vmatprep.subr.mxu0 0.0
    %548 = vmatpush1.msra.mxu0 0.0
    %549 = vmatprep.subr.mxu0 0.0
    %550 = vmatpush1.msra.mxu0 0.0
    %551 = vmatprep.subr.mxu0 0.0
    %552 = vmatpush1.msra.mxu0 0.0
    %553 = vmatprep.subr.mxu0 0.0
    %554 = vmatpush1.msra.mxu0 0.0
    %555 = vmatprep.subr.mxu0 0.0
    %556 = vmatpush1.msra.mxu0 0.0
    %557 = vmatprep.mubr.f32.mxu0 0.0
    %558 = vmatmul.mubr.f32.gmra.mrb[0].mxu0 %v491
    %v559 = vpop.f32.mrb[0].mxu0
    %v560 = vadd.f32 %v486, %v559
    %v561 = vpop.f32.mrb[0].mxu0
    %v562 = vadd.f32 %v487, %v561
    %563 = vdwg.mxu0
    %v564 = vxor.u32 %v560, 2147483648
    %v565 = vxor.u32 %v562, 2147483648
    %v566 = vmul.f32 %v564, 1.442695
    %v567 = vpow.pop %v566
    %v568 = vmul.f32 %v565, 1.442695
    %v569 = vpow.pop %v568
    %v570 = vadd.f32 %v567, 1.0
    %v571 = vadd.f32 %v569, 1.0
    %v572 = vrcp.pop %v570
    %v573 = vmul.f32 1.0, %v572
    %v574 = vrcp.pop %v571
    %v575 = vmul.f32 1.0, %v574
    %v576 = vtanh.pop %v562
    %v577 = vmul.f32 %v573, %v479
    %579 = vrot.lane.b32.xlu0 %v576, 64
    %v580 = vpop.permute.xlu0 %579
    %v582 = vmul.f32 %v573, %v580
    %584 = vrot.lane.b32.xlu0 %v582, 64
    %v585 = vpop.permute.xlu0 %584
    %v587 = vadd.f32 %v577, %v585
    %v588 = vtanh.pop %v587
    %590 = vrot.lane.b32.xlu0 %v588, 64
    %v591 = vpop.permute.xlu0 %590
    %v593 = vmul.f32 %v575, %v591
    %v595 = vsel %vm163, %v593, 0
    %597 = vmatprep.subr.mxu0 %v45
    %598 = vmatpush1.msra.mxu0 %v44
    %599 = vmatprep.subr.mxu0 %v47
    %600 = vmatpush1.msra.mxu0 %v46
    %601 = vmatprep.subr.mxu0 %v49
    %602 = vmatpush1.msra.mxu0 %v48
    %603 = vmatprep.subr.mxu0 %v51
    %604 = vmatpush1.msra.mxu0 %v50
    %605 = vmatprep.subr.mxu0 %v53
    %606 = vmatpush1.msra.mxu0 %v52
    %607 = vmatprep.subr.mxu0 %v55
    %608 = vmatpush1.msra.mxu0 %v54
    %609 = vmatprep.subr.mxu0 %v57
    %610 = vmatpush1.msra.mxu0 %v56
    %611 = vmatprep.subr.mxu0 %v59
    %612 = vmatpush1.msra.mxu0 %v58
    %613 = vmatprep.subr.mxu0 0.0
    %614 = vmatpush1.msra.mxu0 0.0
    %615 = vmatprep.subr.mxu0 0.0
    %616 = vmatpush1.msra.mxu0 0.0
    %617 = vmatprep.subr.mxu0 0.0
    %618 = vmatpush1.msra.mxu0 0.0
    %619 = vmatprep.subr.mxu0 0.0
    %620 = vmatpush1.msra.mxu0 0.0
    %621 = vmatprep.subr.mxu0 0.0
    %622 = vmatpush1.msra.mxu0 0.0
    %623 = vmatprep.subr.mxu0 0.0
    %624 = vmatpush1.msra.mxu0 0.0
    %625 = vmatprep.subr.mxu0 0.0
    %626 = vmatpush1.msra.mxu0 0.0
    %627 = vmatprep.subr.mxu0 0.0
    %628 = vmatpush1.msra.mxu0 0.0
    %629 = vmatprep.subr.mxu0 0.0
    %630 = vmatpush1.msra.mxu0 0.0
    %631 = vmatprep.subr.mxu0 0.0
    %632 = vmatpush1.msra.mxu0 0.0
    %633 = vmatprep.subr.mxu0 0.0
    %634 = vmatpush1.msra.mxu0 0.0
    %635 = vmatprep.subr.mxu0 0.0
    %636 = vmatpush1.msra.mxu0 0.0
    %637 = vmatprep.subr.mxu0 0.0
    %638 = vmatpush1.msra.mxu0 0.0
    %639 = vmatprep.subr.mxu0 0.0
    %640 = vmatpush1.msra.mxu0 0.0
    %641 = vmatprep.subr.mxu0 0.0
    %642 = vmatpush1.msra.mxu0 0.0
    %643 = vmatprep.subr.mxu0 0.0
    %644 = vmatpush1.msra.mxu0 0.0
    %645 = vmatprep.subr.mxu0 0.0
    %646 = vmatpush1.msra.mxu0 0.0
    %647 = vmatprep.subr.mxu0 0.0
    %648 = vmatpush1.msra.mxu0 0.0
    %649 = vmatprep.subr.mxu0 0.0
    %650 = vmatpush1.msra.mxu0 0.0
    %651 = vmatprep.subr.mxu0 0.0
    %652 = vmatpush1.msra.mxu0 0.0
    %653 = vmatprep.subr.mxu0 0.0
    %654 = vmatpush1.msra.mxu0 0.0
    %655 = vmatprep.subr.mxu0 0.0
    %656 = vmatpush1.msra.mxu0 0.0
    %657 = vmatprep.subr.mxu0 0.0
    %658 = vmatpush1.msra.mxu0 0.0
    %659 = vmatprep.subr.mxu0 0.0
    %660 = vmatpush1.msra.mxu0 0.0
    %661 = vmatprep.mubr.f32.mxu0 0.0
    %662 = vmatmul.mubr.f32.gmra.mrb[0].mxu0 %v595
    %v663 = vpop.f32.mrb[0].mxu0
    %v664 = vadd.f32 %v159, %v663
    %v665 = vpop.f32.mrb[0].mxu0
    %v666 = vadd.f32 %v161, %v665
    %667 = vdwg.mxu0
    %v668 = vxor.u32 %v664, 2147483648
    %v669 = vxor.u32 %v666, 2147483648
    %v670 = vmul.f32 %v668, 1.442695
    %v671 = vpow.pop %v670
    %v672 = vmul.f32 %v669, 1.442695
    %v673 = vpow.pop %v672
    %v674 = vadd.f32 %v671, 1.0
    %v675 = vadd.f32 %v673, 1.0
    %v676 = vrcp.pop %v674
    %v677 = vmul.f32 1.0, %v676
    %v678 = vrcp.pop %v675
    %v679 = vmul.f32 1.0, %v678
    %v680 = vtanh.pop %v666
    %v681 = vmul.f32 %v677, %v587
    %683 = vrot.lane.b32.xlu0 %v680, 64
    %v684 = vpop.permute.xlu0 %683
    %v686 = vmul.f32 %v677, %v684
    %688 = vrot.lane.b32.xlu0 %v686, 64
    %v689 = vpop.permute.xlu0 %688
    %v691 = vadd.f32 %v681, %v689
    %v692 = vtanh.pop %v691
    %694 = vrot.lane.b32.xlu0 %v692, 64
    %v695 = vpop.permute.xlu0 %694
    %v697 = vmul.f32 %v679, %v695
    %v700 = vrot.slane %v159, 2
    %v701 = vrot.slane %v161, 2
    %v705 = vsel %vm163, %v697, 0
    %707 = vmatprep.subr.mxu0 %v45
    %708 = vmatpush1.msra.mxu0 %v44
    %709 = vmatprep.subr.mxu0 %v47
    %710 = vmatpush1.msra.mxu0 %v46
    %711 = vmatprep.subr.mxu0 %v49
    %712 = vmatpush1.msra.mxu0 %v48
    %713 = vmatprep.subr.mxu0 %v51
    %714 = vmatpush1.msra.mxu0 %v50
    %715 = vmatprep.subr.mxu0 %v53
    %716 = vmatpush1.msra.mxu0 %v52
    %717 = vmatprep.subr.mxu0 %v55
    %718 = vmatpush1.msra.mxu0 %v54
    %719 = vmatprep.subr.mxu0 %v57
    %720 = vmatpush1.msra.mxu0 %v56
    %721 = vmatprep.subr.mxu0 %v59
    %722 = vmatpush1.msra.mxu0 %v58
    %723 = vmatprep.subr.mxu0 0.0
    %724 = vmatpush1.msra.mxu0 0.0
    %725 = vmatprep.subr.mxu0 0.0
    %726 = vmatpush1.msra.mxu0 0.0
    %727 = vmatprep.subr.mxu0 0.0
    %728 = vmatpush1.msra.mxu0 0.0
    %729 = vmatprep.subr.mxu0 0.0
    %730 = vmatpush1.msra.mxu0 0.0
    %731 = vmatprep.subr.mxu0 0.0
    %732 = vmatpush1.msra.mxu0 0.0
    %733 = vmatprep.subr.mxu0 0.0
    %734 = vmatpush1.msra.mxu0 0.0
    %735 = vmatprep.subr.mxu0 0.0
    %736 = vmatpush1.msra.mxu0 0.0
    %737 = vmatprep.subr.mxu0 0.0
    %738 = vmatpush1.msra.mxu0 0.0
    %739 = vmatprep.subr.mxu0 0.0
    %740 = vmatpush1.msra.mxu0 0.0
    %741 = vmatprep.subr.mxu0 0.0
    %742 = vmatpush1.msra.mxu0 0.0
    %743 = vmatprep.subr.mxu0 0.0
    %744 = vmatpush1.msra.mxu0 0.0
    %745 = vmatprep.subr.mxu0 0.0
    %746 = vmatpush1.msra.mxu0 0.0
    %747 = vmatprep.subr.mxu0 0.0
    %748 = vmatpush1.msra.mxu0 0.0
    %749 = vmatprep.subr.mxu0 0.0
    %750 = vmatpush1.msra.mxu0 0.0
    %751 = vmatprep.subr.mxu0 0.0
    %752 = vmatpush1.msra.mxu0 0.0
    %753 = vmatprep.subr.mxu0 0.0
    %754 = vmatpush1.msra.mxu0 0.0
    %755 = vmatprep.subr.mxu0 0.0
    %756 = vmatpush1.msra.mxu0 0.0
    %757 = vmatprep.subr.mxu0 0.0
    %758 = vmatpush1.msra.mxu0 0.0
    %759 = vmatprep.subr.mxu0 0.0
    %760 = vmatpush1.msra.mxu0 0.0
    %761 = vmatprep.subr.mxu0 0.0
    %762 = vmatpush1.msra.mxu0 0.0
    %763 = vmatprep.subr.mxu0 0.0
    %764 = vmatpush1.msra.mxu0 0.0
    %765 = vmatprep.subr.mxu0 0.0
    %766 = vmatpush1.msra.mxu0 0.0
    %767 = vmatprep.subr.mxu0 0.0
    %768 = vmatpush1.msra.mxu0 0.0
    %769 = vmatprep.subr.mxu0 0.0
    %770 = vmatpush1.msra.mxu0 0.0
    %771 = vmatprep.mubr.f32.mxu0 0.0
    %772 = vmatmul.mubr.f32.gmra.mrb[0].mxu0 %v705
    %v773 = vpop.f32.mrb[0].mxu0
    %v774 = vadd.f32 %v700, %v773
    %v775 = vpop.f32.mrb[0].mxu0
    %v776 = vadd.f32 %v701, %v775
    %777 = vdwg.mxu0
    %v778 = vxor.u32 %v774, 2147483648
    %v779 = vxor.u32 %v776, 2147483648
    %v780 = vmul.f32 %v778, 1.442695
    %v781 = vpow.pop %v780
    %v782 = vmul.f32 %v779, 1.442695
    %v783 = vpow.pop %v782
    %v784 = vadd.f32 %v781, 1.0
    %v785 = vadd.f32 %v783, 1.0
    %v786 = vrcp.pop %v784
    %v787 = vmul.f32 1.0, %v786
    %v788 = vrcp.pop %v785
    %v789 = vmul.f32 1.0, %v788
    %v790 = vtanh.pop %v776
    %v791 = vmul.f32 %v787, %v691
    %793 = vrot.lane.b32.xlu0 %v790, 64
    %v794 = vpop.permute.xlu0 %793
    %v796 = vmul.f32 %v787, %v794
    %798 = vrot.lane.b32.xlu0 %v796, 64
    %v799 = vpop.permute.xlu0 %798
    %v801 = vadd.f32 %v791, %v799
    %v802 = vtanh.pop %v801
    %804 = vrot.lane.b32.xlu0 %v802, 64
    %v805 = vpop.permute.xlu0 %804
    %v807 = vmul.f32 %v789, %v805
    %v808 = vrot.slane %v159, 4
    %v809 = vrot.slane %v161, 4
    %v813 = vsel %vm163, %v807, 0
    %815 = vmatprep.subr.mxu0 %v45
    %816 = vmatpush1.msra.mxu0 %v44
    %817 = vmatprep.subr.mxu0 %v47
    %818 = vmatpush1.msra.mxu0 %v46
    %819 = vmatprep.subr.mxu0 %v49
    %820 = vmatpush1.msra.mxu0 %v48
    %821 = vmatprep.subr.mxu0 %v51
    %822 = vmatpush1.msra.mxu0 %v50
    %823 = vmatprep.subr.mxu0 %v53
    %824 = vmatpush1.msra.mxu0 %v52
    %825 = vmatprep.subr.mxu0 %v55
    %826 = vmatpush1.msra.mxu0 %v54
    %827 = vmatprep.subr.mxu0 %v57
    %828 = vmatpush1.msra.mxu0 %v56
    %829 = vmatprep.subr.mxu0 %v59
    %830 = vmatpush1.msra.mxu0 %v58
    %831 = vmatprep.subr.mxu0 0.0
    %832 = vmatpush1.msra.mxu0 0.0
    %833 = vmatprep.subr.mxu0 0.0
    %834 = vmatpush1.msra.mxu0 0.0
    %835 = vmatprep.subr.mxu0 0.0
    %836 = vmatpush1.msra.mxu0 0.0
    %837 = vmatprep.subr.mxu0 0.0
    %838 = vmatpush1.msra.mxu0 0.0
    %839 = vmatprep.subr.mxu0 0.0
    %840 = vmatpush1.msra.mxu0 0.0
    %841 = vmatprep.subr.mxu0 0.0
    %842 = vmatpush1.msra.mxu0 0.0
    %843 = vmatprep.subr.mxu0 0.0
    %844 = vmatpush1.msra.mxu0 0.0
    %845 = vmatprep.subr.mxu0 0.0
    %846 = vmatpush1.msra.mxu0 0.0
    %847 = vmatprep.subr.mxu0 0.0
    %848 = vmatpush1.msra.mxu0 0.0
    %849 = vmatprep.subr.mxu0 0.0
    %850 = vmatpush1.msra.mxu0 0.0
    %851 = vmatprep.subr.mxu0 0.0
    %852 = vmatpush1.msra.mxu0 0.0
    %853 = vmatprep.subr.mxu0 0.0
    %854 = vmatpush1.msra.mxu0 0.0
    %855 = vmatprep.subr.mxu0 0.0
    %856 = vmatpush1.msra.mxu0 0.0
    %857 = vmatprep.subr.mxu0 0.0
    %858 = vmatpush1.msra.mxu0 0.0
    %859 = vmatprep.subr.mxu0 0.0
    %860 = vmatpush1.msra.mxu0 0.0
    %861 = vmatprep.subr.mxu0 0.0
    %862 = vmatpush1.msra.mxu0 0.0
    %863 = vmatprep.subr.mxu0 0.0
    %864 = vmatpush1.msra.mxu0 0.0
    %865 = vmatprep.subr.mxu0 0.0
    %866 = vmatpush1.msra.mxu0 0.0
    %867 = vmatprep.subr.mxu0 0.0
    %868 = vmatpush1.msra.mxu0 0.0
    %869 = vmatprep.subr.mxu0 0.0
    %870 = vmatpush1.msra.mxu0 0.0
    %871 = vmatprep.subr.mxu0 0.0
    %872 = vmatpush1.msra.mxu0 0.0
    %873 = vmatprep.subr.mxu0 0.0
    %874 = vmatpush1.msra.mxu0 0.0
    %875 = vmatprep.subr.mxu0 0.0
    %876 = vmatpush1.msra.mxu0 0.0
    %877 = vmatprep.subr.mxu0 0.0
    %878 = vmatpush1.msra.mxu0 0.0
    %879 = vmatprep.mubr.f32.mxu0 0.0
    %880 = vmatmul.mubr.f32.gmra.mrb[0].mxu0 %v813
    %v881 = vpop.f32.mrb[0].mxu0
    %v882 = vadd.f32 %v808, %v881
    %v883 = vpop.f32.mrb[0].mxu0
    %v884 = vadd.f32 %v809, %v883
    %885 = vdwg.mxu0
    %v886 = vxor.u32 %v882, 2147483648
    %v887 = vxor.u32 %v884, 2147483648
    %v888 = vmul.f32 %v886, 1.442695
    %v889 = vpow.pop %v888
    %v890 = vmul.f32 %v887, 1.442695
    %v891 = vpow.pop %v890
    %v892 = vadd.f32 %v889, 1.0
    %v893 = vadd.f32 %v891, 1.0
    %v894 = vrcp.pop %v892
    %v895 = vmul.f32 1.0, %v894
    %v896 = vrcp.pop %v893
    %v897 = vmul.f32 1.0, %v896
    %v898 = vtanh.pop %v884
    %v899 = vmul.f32 %v895, %v801
    %901 = vrot.lane.b32.xlu0 %v898, 64
    %v902 = vpop.permute.xlu0 %901
    %v904 = vmul.f32 %v895, %v902
    %906 = vrot.lane.b32.xlu0 %v904, 64
    %v907 = vpop.permute.xlu0 %906
    %v909 = vadd.f32 %v899, %v907
    %v910 = vtanh.pop %v909
    %912 = vrot.lane.b32.xlu0 %v910, 64
    %v913 = vpop.permute.xlu0 %912
    %v915 = vmul.f32 %v897, %v913
    %v916 = vrot.slane %v159, 6
    %v917 = vrot.slane %v161, 6
    %v921 = vsel %vm163, %v915, 0
    %923 = vmatprep.subr.mxu0 %v45
    %924 = vmatpush1.msra.mxu0 %v44
    %925 = vmatprep.subr.mxu0 %v47
    %926 = vmatpush1.msra.mxu0 %v46
    %927 = vmatprep.subr.mxu0 %v49
    %928 = vmatpush1.msra.mxu0 %v48
    %929 = vmatprep.subr.mxu0 %v51
    %930 = vmatpush1.msra.mxu0 %v50
    %931 = vmatprep.subr.mxu0 %v53
    %932 = vmatpush1.msra.mxu0 %v52
    %933 = vmatprep.subr.mxu0 %v55
    %934 = vmatpush1.msra.mxu0 %v54
    %935 = vmatprep.subr.mxu0 %v57
    %936 = vmatpush1.msra.mxu0 %v56
    %937 = vmatprep.subr.mxu0 %v59
    %938 = vmatpush1.msra.mxu0 %v58
    %939 = vmatprep.subr.mxu0 0.0
    %940 = vmatpush1.msra.mxu0 0.0
    %941 = vmatprep.subr.mxu0 0.0
    %942 = vmatpush1.msra.mxu0 0.0
    %943 = vmatprep.subr.mxu0 0.0
    %944 = vmatpush1.msra.mxu0 0.0
    %945 = vmatprep.subr.mxu0 0.0
    %946 = vmatpush1.msra.mxu0 0.0
    %947 = vmatprep.subr.mxu0 0.0
    %948 = vmatpush1.msra.mxu0 0.0
    %949 = vmatprep.subr.mxu0 0.0
    %950 = vmatpush1.msra.mxu0 0.0
    %951 = vmatprep.subr.mxu0 0.0
    %952 = vmatpush1.msra.mxu0 0.0
    %953 = vmatprep.subr.mxu0 0.0
    %954 = vmatpush1.msra.mxu0 0.0
    %955 = vmatprep.subr.mxu0 0.0
    %956 = vmatpush1.msra.mxu0 0.0
    %957 = vmatprep.subr.mxu0 0.0
    %958 = vmatpush1.msra.mxu0 0.0
    %959 = vmatprep.subr.mxu0 0.0
    %960 = vmatpush1.msra.mxu0 0.0
    %961 = vmatprep.subr.mxu0 0.0
    %962 = vmatpush1.msra.mxu0 0.0
    %963 = vmatprep.subr.mxu0 0.0
    %964 = vmatpush1.msra.mxu0 0.0
    %965 = vmatprep.subr.mxu0 0.0
    %966 = vmatpush1.msra.mxu0 0.0
    %967 = vmatprep.subr.mxu0 0.0
    %968 = vmatpush1.msra.mxu0 0.0
    %969 = vmatprep.subr.mxu0 0.0
    %970 = vmatpush1.msra.mxu0 0.0
    %971 = vmatprep.subr.mxu0 0.0
    %972 = vmatpush1.msra.mxu0 0.0
    %973 = vmatprep.subr.mxu0 0.0
    %974 = vmatpush1.msra.mxu0 0.0
    %975 = vmatprep.subr.mxu0 0.0
    %976 = vmatpush1.msra.mxu0 0.0
    %977 = vmatprep.subr.mxu0 0.0
    %978 = vmatpush1.msra.mxu0 0.0
    %979 = vmatprep.subr.mxu0 0.0
    %980 = vmatpush1.msra.mxu0 0.0
    %981 = vmatprep.subr.mxu0 0.0
    %982 = vmatpush1.msra.mxu0 0.0
    %983 = vmatprep.subr.mxu0 0.0
    %984 = vmatpush1.msra.mxu0 0.0
    %985 = vmatprep.subr.mxu0 0.0
    %986 = vmatpush1.msra.mxu0 0.0
    %987 = vmatprep.mubr.f32.mxu0 0.0
    %988 = vmatmul.mubr.f32.gmra.mrb[0].mxu0 %v921
    %v989 = vpop.f32.mrb[0].mxu0
    %v990 = vadd.f32 %v916, %v989
    %v991 = vpop.f32.mrb[0].mxu0
    %v992 = vadd.f32 %v917, %v991
    %993 = vdwg.mxu0
    %v994 = vxor.u32 %v990, 2147483648
    %v995 = vxor.u32 %v992, 2147483648
    %v996 = vmul.f32 %v994, 1.442695
    %v997 = vpow.pop %v996
    %v998 = vmul.f32 %v995, 1.442695
    %v999 = vpow.pop %v998
    %v1000 = vadd.f32 %v997, 1.0
    %v1001 = vadd.f32 %v999, 1.0
    %v1002 = vrcp.pop %v1000
    %v1003 = vmul.f32 1.0, %v1002
    %v1004 = vrcp.pop %v1001
    %v1005 = vmul.f32 1.0, %v1004
    %v1006 = vtanh.pop %v992
    %v1007 = vmul.f32 %v1003, %v909
    %1009 = vrot.lane.b32.xlu0 %v1006, 64
    %v1010 = vpop.permute.xlu0 %1009
    %v1012 = vmul.f32 %v1003, %v1010
    %1014 = vrot.lane.b32.xlu0 %v1012, 64
    %v1015 = vpop.permute.xlu0 %1014
    %v1017 = vadd.f32 %v1007, %v1015
    %v1018 = vtanh.pop %v1017
    %1020 = vrot.lane.b32.xlu0 %v1018, 64
    %v1021 = vpop.permute.xlu0 %1020
    %v1023 = vmul.f32 %v1005, %v1021
    %s1024 = sld [smem:[#allocation2]]
    %v1025 = vld [vmem:[%s4] sm:$0xff]
    %v1026 = vld [vmem:[%s4 + $0x8] sm:$0xff]
    %v1027 = vld [vmem:[%s4 + $0x10] sm:$0xff]
    %v1028 = vld [vmem:[%s4 + $0x18] sm:$0xff]
    %v1029 = vld [vmem:[%s4 + $0x20] sm:$0xff]
    %v1030 = vld [vmem:[%s4 + $0x28] sm:$0xff]
    %v1031 = vld [vmem:[%s4 + $0x30] sm:$0xff]
    %v1032 = vld [vmem:[%s4 + $0x38] sm:$0xff]
    %v1033 = vstv %s1024
    %v1035 = vsel %vm163, %v1023, 0
    %1037 = vmatprep.subr.mxu0 0.0
    %1038 = vmatpush1.msra.mxu0 %v1025
    %1039 = vmatprep.subr.mxu0 0.0
    %1040 = vmatpush1.msra.mxu0 %v1026
    %1041 = vmatprep.subr.mxu0 0.0
    %1042 = vmatpush1.msra.mxu0 %v1027
    %1043 = vmatprep.subr.mxu0 0.0
    %1044 = vmatpush1.msra.mxu0 %v1028
    %1045 = vmatprep.subr.mxu0 0.0
    %1046 = vmatpush1.msra.mxu0 %v1029
    %1047 = vmatprep.subr.mxu0 0.0
    %1048 = vmatpush1.msra.mxu0 %v1030
    %1049 = vmatprep.subr.mxu0 0.0
    %1050 = vmatpush1.msra.mxu0 %v1031
    %1051 = vmatprep.subr.mxu0 0.0
    %1052 = vmatpush1.msra.mxu0 %v1032
    %1053 = vmatprep.subr.mxu0 0.0
    %1054 = vmatpush1.msra.mxu0 0.0
    %1055 = vmatprep.subr.mxu0 0.0
    %1056 = vmatpush1.msra.mxu0 0.0
    %1057 = vmatprep.subr.mxu0 0.0
    %1058 = vmatpush1.msra.mxu0 0.0
    %1059 = vmatprep.subr.mxu0 0.0
    %1060 = vmatpush1.msra.mxu0 0.0
    %1061 = vmatprep.subr.mxu0 0.0
    %1062 = vmatpush1.msra.mxu0 0.0
    %1063 = vmatprep.subr.mxu0 0.0
    %1064 = vmatpush1.msra.mxu0 0.0
    %1065 = vmatprep.subr.mxu0 0.0
    %1066 = vmatpush1.msra.mxu0 0.0
    %1067 = vmatprep.subr.mxu0 0.0
    %1068 = vmatpush1.msra.mxu0 0.0
    %1069 = vmatprep.subr.mxu0 0.0
    %1070 = vmatpush1.msra.mxu0 0.0
    %1071 = vmatprep.subr.mxu0 0.0
    %1072 = vmatpush1.msra.mxu0 0.0
    %1073 = vmatprep.subr.mxu0 0.0
    %1074 = vmatpush1.msra.mxu0 0.0
    %1075 = vmatprep.subr.mxu0 0.0
    %1076 = vmatpush1.msra.mxu0 0.0
    %1077 = vmatprep.subr.mxu0 0.0
    %1078 = vmatpush1.msra.mxu0 0.0
    %1079 = vmatprep.subr.mxu0 0.0
    %1080 = vmatpush1.msra.mxu0 0.0
    %1081 = vmatprep.subr.mxu0 0.0
    %1082 = vmatpush1.msra.mxu0 0.0
    %1083 = vmatprep.subr.mxu0 0.0
    %1084 = vmatpush1.msra.mxu0 0.0
    %1085 = vmatprep.subr.mxu0 0.0
    %1086 = vmatpush1.msra.mxu0 0.0
    %1087 = vmatprep.subr.mxu0 0.0
    %1088 = vmatpush1.msra.mxu0 0.0
    %1089 = vmatprep.subr.mxu0 0.0
    %1090 = vmatpush1.msra.mxu0 0.0
    %1091 = vmatprep.subr.mxu0 0.0
    %1092 = vmatpush1.msra.mxu0 0.0
    %1093 = vmatprep.subr.mxu0 0.0
    %1094 = vmatpush1.msra.mxu0 0.0
    %1095 = vmatprep.subr.mxu0 0.0
    %1096 = vmatpush1.msra.mxu0 0.0
    %1097 = vmatprep.subr.mxu0 0.0
    %1098 = vmatpush1.msra.mxu0 0.0
    %1099 = vmatprep.subr.mxu0 0.0
    %1100 = vmatpush1.msra.mxu0 0.0
    %1101 = vmatprep.mubr.f32.mxu0 0.0
    %1102 = vmatmul.mubr.f32.gmra.mrb[0].mxu0 %v1035
    %v1103 = vpop.f32.mrb[0].mxu0
    %v1104 = vadd.f32 %v1033, %v1103
    %v1105 = vpop.f32.mrb[0].mxu0
    %1106 = vdwg.mxu0
    %vm1107 = vcmask 1024
    %1108 = vst.msk [vmem:[%s6] sm:$0x3] %vm1107, %v1104
    // Predicated region
    $region30: #{tpu_custom_call.1} parent=1 // pred_check
      _
    $region31: #{tpu_custom_call.1} parent=1 // pred_check_branch
      %1110 = sbr.rel (0) target = $region33
    $region32: #{tpu_custom_call.1} parent=1 // pred_region
      _
    $region33: #{tpu_custom_call.1} parent=1 // pred_fallthru
      _
    // Predicated region
    $region34: #{tpu_custom_call.1} parent=1 // pred_check
      _
    $region35: #{tpu_custom_call.1} parent=1 // pred_check_branch
      %1112 = sbr.rel (0) target = $region37
    $region36: #{tpu_custom_call.1} parent=1 // pred_region
      _
    $region37: #{tpu_custom_call.1} parent=1 // pred_fallthru
      _
    %1113 = vsyncpa [#allocation4], 1

</llo_original>
